<compile_context>
chip_gen: v7x
topology: tpu7x:2x2x1
jax: 0.10.0
libtpu: 0.0.40
codegen_flags: <defaults>
</compile_context>

<pallas_src>
import functools

import jax
import jax.numpy as jnp
from jax.experimental import pallas as pl
from jax.experimental.pallas import tpu as pltpu


def _gconv(a, x, w_rel, w_root, b, *, compute_dtype):
    """One GraphConv layer; matmul order chosen statically from the shapes.

    a:      (N, N)        dense aggregation matrix (A[i, j] = #edges j->i)
    x:      (N, F_in)     node features
    w_rel:  (F_in, F_out) weight applied to aggregated neighbors (lin_rel)
    w_root: (F_in, F_out) weight applied to the root/self features (lin_root)
    b:      (1, F_out)    bias of lin_rel
    """
    f_in, f_out = w_rel.shape
    ac = a.astype(compute_dtype)
    xc = x.astype(compute_dtype)
    if f_out < f_in:
        # Project first: shrinks the (N, N) @ (N, .) matmul RHS to F_out cols.
        t = jnp.dot(xc, w_rel.astype(compute_dtype),
                    preferred_element_type=jnp.float32)
        rel = jnp.dot(ac, t.astype(compute_dtype),
                      preferred_element_type=jnp.float32)
    else:
        # Aggregate first.
        agg = jnp.dot(ac, xc, preferred_element_type=jnp.float32)
        rel = jnp.dot(agg.astype(compute_dtype), w_rel.astype(compute_dtype),
                      preferred_element_type=jnp.float32)
    root = jnp.dot(xc, w_root.astype(compute_dtype),
                   preferred_element_type=jnp.float32)
    return rel + root + b


def _fused_gcn_kernel(a_ref, x_ref,
                      w1_rel_ref, w1_root_ref, b1_ref,
                      w2_rel_ref, w2_root_ref, b2_ref,
                      o_ref, *, compute_dtype):
    """Both GraphConv layers + ReLU, fully resident on-chip (single launch)."""
    a = a_ref[...]
    x = x_ref[...]

    # ---- Layer 1 (F_in -> 16) + fused ReLU; intermediate stays on-chip. ----
    h = _gconv(a, x, w1_rel_ref[...], w1_root_ref[...], b1_ref[...],
               compute_dtype=compute_dtype)
    h = jnp.maximum(h, 0.0)

    # ---- Layer 2 (16 -> 2). ----
    out = _gconv(a, h, w2_rel_ref[...], w2_root_ref[...], b2_ref[...],
                 compute_dtype=compute_dtype)
    o_ref[...] = out.astype(o_ref.dtype)


def gcn_forward(a, x, params, *, compute_dtype=jnp.float32):
    """Single fused pallas_call for the whole 2-layer forward pass.

    Small problem: no grid; every operand is one full-array VMEM block.
    # TODO(synk): for large N, tile A over rows with a grid (two-phase h)
    #             before the dense f32 A hits the v7x 64 MiB VMEM ceiling.
    """
    n = x.shape[0]
    f_out = params["conv2"]["w_rel"].shape[1]

    kernel = functools.partial(_fused_gcn_kernel, compute_dtype=compute_dtype)
    vmem = pl.BlockSpec(memory_space=pltpu.MemorySpace.VMEM)

    return pl.pallas_call(
        kernel,
        out_shape=jax.ShapeDtypeStruct((n, f_out), jnp.float32),
        in_specs=[vmem] * 8,
        out_specs=vmem,
        compiler_params=pltpu.CompilerParams(
            vmem_limit_bytes=32 * 1024 * 1024),
    )(a, x,
      params["conv1"]["w_rel"], params["conv1"]["w_root"], params["conv1"]["b"],
      params["conv2"]["w_rel"], params["conv2"]["w_root"], params["conv2"]["b"])


def edge_index_to_dense(edge_index, num_nodes):
    """Dense message matrix A with A[dst, src] += 1 for every edge (JAX glue)."""
    src = edge_index[0]
    dst = edge_index[1]
    a = jnp.zeros((num_nodes, num_nodes), dtype=jnp.float32)
    return a.at[dst, src].add(1.0)


def init_params(key, f_in, hidden, f_out):
    """Deterministic Glorot-style init matching GraphConv(-1,16), GraphConv(16,2)."""
    ks = jax.random.split(key, 4)

    def glorot(k, fan_in, fan_out):
        scale = jnp.sqrt(6.0 / (fan_in + fan_out))
        return jax.random.uniform(k, (fan_in, fan_out), jnp.float32,
                                  minval=-scale, maxval=scale)

    return {
        "conv1": {
            "w_rel": glorot(ks[0], f_in, hidden),
            "w_root": glorot(ks[1], f_in, hidden),
            "b": jnp.zeros((1, hidden), jnp.float32),
        },
        "conv2": {
            "w_rel": glorot(ks[2], hidden, f_out),
            "w_root": glorot(ks[3], hidden, f_out),
            "b": jnp.zeros((1, f_out), jnp.float32),
        },
    }


@jax.jit
def model_forward(x, a, params):
    return gcn_forward(a, x, params)


def model_forward_ref(x, a, params):
    """Pure-JAX reference for sanity checking."""
    h = a @ x @ params["conv1"]["w_rel"] + x @ params["conv1"]["w_root"] \
        + params["conv1"]["b"]
    h = jnp.maximum(h, 0.0)
    out = a @ h @ params["conv2"]["w_rel"] + h @ params["conv2"]["w_root"] \
        + params["conv2"]["b"]
    return out


if __name__ == "__main__":
    N = 16        # number of nodes
    F_IN = 8      # input feature dim (GraphConv(-1, ...) -> lazily inferred)
    HIDDEN = 16
    F_OUT = 2

    key = jax.random.PRNGKey(0)
    k_x, k_params = jax.random.split(key)

    # Node features (N, F_in).
    x = jax.random.normal(k_x, (N, F_IN), jnp.float32)

    # Deterministic ring graph, bidirectional edges: i <-> (i+1) % N.
    idx = jnp.arange(N)
    src = jnp.concatenate([idx, (idx + 1) % N])
    dst = jnp.concatenate([(idx + 1) % N, idx])
    edge_index = jnp.stack([src, dst]).astype(jnp.int32)   # (2, 2N)

    a = edge_index_to_dense(edge_index, N)
    params = init_params(k_params, F_IN, HIDDEN, F_OUT)

    out = model_forward(x, a, params)
    out = jax.block_until_ready(out)

    ref = model_forward_ref(x, a, params)
    assert out.shape == (N, F_OUT)
    assert jnp.allclose(out, ref, atol=1e-4, rtol=1e-4), "mismatch vs reference"

    print("KERNEL_OK")
</pallas_src>

<mosaic_0001>
module attributes {stable_mosaic.version = 11 : i64} {
  func.func @_fused_gcn_kernel(%arg0: memref<16x16xf32, #tpu.memory_space<vmem>>, %arg1: memref<16x8xf32, #tpu.memory_space<vmem>>, %arg2: memref<8x16xf32, #tpu.memory_space<vmem>>, %arg3: memref<8x16xf32, #tpu.memory_space<vmem>>, %arg4: memref<1x16xf32, #tpu.memory_space<vmem>>, %arg5: memref<16x2xf32, #tpu.memory_space<vmem>>, %arg6: memref<16x2xf32, #tpu.memory_space<vmem>>, %arg7: memref<1x2xf32, #tpu.memory_space<vmem>>, %arg8: memref<16x2xf32, #tpu.memory_space<vmem>>) attributes {dimension_semantics = [], scalar_prefetch = 0 : i64, scratch_operands = 0 : i64, tpu.core_type = #tpu.core_type<tc>} {
    %c0 = arith.constant 0 : index
    %c0_0 = arith.constant 0 : index
    %0 = vector.load %arg0[%c0, %c0_0] : memref<16x16xf32, #tpu.memory_space<vmem>>, vector<16x16xf32>
    %c0_1 = arith.constant 0 : index
    %c0_2 = arith.constant 0 : index
    %1 = vector.load %arg1[%c0_1, %c0_2] : memref<16x8xf32, #tpu.memory_space<vmem>>, vector<16x8xf32>
    %c0_3 = arith.constant 0 : index
    %c0_4 = arith.constant 0 : index
    %2 = vector.load %arg2[%c0_3, %c0_4] : memref<8x16xf32, #tpu.memory_space<vmem>>, vector<8x16xf32>
    %c0_5 = arith.constant 0 : index
    %c0_6 = arith.constant 0 : index
    %3 = vector.load %arg3[%c0_5, %c0_6] : memref<8x16xf32, #tpu.memory_space<vmem>>, vector<8x16xf32>
    %c0_7 = arith.constant 0 : index
    %c0_8 = arith.constant 0 : index
    %4 = vector.load %arg4[%c0_7, %c0_8] : memref<1x16xf32, #tpu.memory_space<vmem>>, vector<1x16xf32>
    %cst = arith.constant dense<0.000000e+00> : vector<16x8xf32>
    %5 = tpu.matmul %0, %1, %cst {dimension_numbers = #tpu.dot_dimension_numbers<[1], [0], [0], [1], [0, 0, 1, 1], [], []>} : vector<16x16xf32>, vector<16x8xf32>, vector<16x8xf32> -> vector<16x8xf32>
    %cst_9 = arith.constant dense<0.000000e+00> : vector<16x16xf32>
    %6 = tpu.matmul %5, %2, %cst_9 {dimension_numbers = #tpu.dot_dimension_numbers<[1], [0], [0], [1], [0, 0, 1, 1], [], []>} : vector<16x8xf32>, vector<8x16xf32>, vector<16x16xf32> -> vector<16x16xf32>
    %cst_10 = arith.constant dense<0.000000e+00> : vector<16x16xf32>
    %7 = tpu.matmul %1, %3, %cst_10 {dimension_numbers = #tpu.dot_dimension_numbers<[1], [0], [0], [1], [0, 0, 1, 1], [], []>} : vector<16x8xf32>, vector<8x16xf32>, vector<16x16xf32> -> vector<16x16xf32>
    %8 = arith.addf %6, %7 : vector<16x16xf32>
    %9 = vector.broadcast %4 : vector<1x16xf32> to vector<16x16xf32>
    %10 = arith.addf %8, %9 : vector<16x16xf32>
    %cst_11 = arith.constant 0.000000e+00 : f32
    %11 = vector.broadcast %cst_11 : f32 to vector<16x16xf32>
    %12 = arith.maximumf %10, %11 : vector<16x16xf32>
    %c0_12 = arith.constant 0 : index
    %c0_13 = arith.constant 0 : index
    %13 = vector.load %arg5[%c0_12, %c0_13] : memref<16x2xf32, #tpu.memory_space<vmem>>, vector<16x2xf32>
    %c0_14 = arith.constant 0 : index
    %c0_15 = arith.constant 0 : index
    %14 = vector.load %arg6[%c0_14, %c0_15] : memref<16x2xf32, #tpu.memory_space<vmem>>, vector<16x2xf32>
    %c0_16 = arith.constant 0 : index
    %c0_17 = arith.constant 0 : index
    %15 = vector.load %arg7[%c0_16, %c0_17] : memref<1x2xf32, #tpu.memory_space<vmem>>, vector<1x2xf32>
    %cst_18 = arith.constant dense<0.000000e+00> : vector<16x2xf32>
    %16 = tpu.matmul %12, %13, %cst_18 {dimension_numbers = #tpu.dot_dimension_numbers<[1], [0], [0], [1], [0, 0, 1, 1], [], []>} : vector<16x16xf32>, vector<16x2xf32>, vector<16x2xf32> -> vector<16x2xf32>
    %cst_19 = arith.constant dense<0.000000e+00> : vector<16x2xf32>
    %17 = tpu.matmul %0, %16, %cst_19 {dimension_numbers = #tpu.dot_dimension_numbers<[1], [0], [0], [1], [0, 0, 1, 1], [], []>} : vector<16x16xf32>, vector<16x2xf32>, vector<16x2xf32> -> vector<16x2xf32>
    %cst_20 = arith.constant dense<0.000000e+00> : vector<16x2xf32>
    %18 = tpu.matmul %12, %14, %cst_20 {dimension_numbers = #tpu.dot_dimension_numbers<[1], [0], [0], [1], [0, 0, 1, 1], [], []>} : vector<16x16xf32>, vector<16x2xf32>, vector<16x2xf32> -> vector<16x2xf32>
    %19 = arith.addf %17, %18 : vector<16x2xf32>
    %20 = vector.broadcast %15 : vector<1x2xf32> to vector<16x2xf32>
    %21 = arith.addf %19, %20 : vector<16x2xf32>
    %c0_21 = arith.constant 0 : index
    %c0_22 = arith.constant 0 : index
    %22 = vector.load %arg8[%c0_21, %c0_22] : memref<16x2xf32, #tpu.memory_space<vmem>>, vector<16x2xf32>
    tpu.vector_store %arg8[%c0_21, %c0_22], %21 {strides = array<i32>} : memref<16x2xf32, #tpu.memory_space<vmem>>, vector<16x2xf32>,
    return
  }
}

</mosaic_0001>

<llo_original>
// kernel: model_forward.1
$region0: #{model_forward.1}
  #allocation0 [shape = 'u32[]', space=smem, size = 0x4, offset = 0x4, fixed_abs, tag = 'smem constant byte address 0x4 - core index']
  #allocation1 [shape = 'u32[144,128]{1,0:T(1,128)}', space=vmem, size = 0x12000, scoped, tag = 'internal scratch']
  %s0 = inlined_call_operand.vmem [shape: f32[16,16], index: 0, kind: input, shape index: {}]
  %s1 = inlined_call_operand.vmem [shape: f32[16,8], index: 1, kind: input, shape index: {}]
  %s2 = inlined_call_operand.vmem [shape: f32[8,16], index: 2, kind: input, shape index: {}]
  %s3 = inlined_call_operand.vmem [shape: f32[8,16], index: 3, kind: input, shape index: {}]
  %s4 = inlined_call_operand.vmem [shape: f32[1,16], index: 4, kind: input, shape index: {}]
  %s5 = inlined_call_operand.vmem [shape: f32[16,2], index: 5, kind: input, shape index: {}]
  %s6 = inlined_call_operand.vmem [shape: f32[16,2], index: 6, kind: input, shape index: {}]
  %s7 = inlined_call_operand.vmem [shape: f32[1,2], index: 7, kind: input, shape index: {}]
  %s8 = inlined_call_operand.vmem [shape: f32[16,2], index: 8, kind: output, shape index: {}]
  %s9 = sld [smem:[#allocation0]]
  $region42: #{model_forward.1} parent=0
    _
  %s11 = ssub.s32 1, %s9
  %s12 = scalar_select 0, %s11, %s9
  // Predicated region
  $region2: #{model_forward.1} parent=0 // pred_check
    _
  $region3: #{model_forward.1} parent=0 // pred_check_branch
    %14 = sbr.rel (0) target = $region5
  $region4: #{model_forward.1} parent=0 // pred_region
    _
  $region5: #{model_forward.1} parent=0 // pred_fallthru
    _
  // Predicated region
  $region6: #{model_forward.1} parent=0 // pred_check
    _
  $region7: #{model_forward.1} parent=0 // pred_check_branch
    %16 = sbr.rel (0) target = $region9
  $region8: #{model_forward.1} parent=0 // pred_region
    _
  $region9: #{model_forward.1} parent=0 // pred_fallthru
    _
  // Predicated region
  $region10: #{model_forward.1} parent=0 // pred_check
    _
  $region11: #{model_forward.1} parent=0 // pred_check_branch
    %18 = sbr.rel (0) target = $region13
  $region12: #{model_forward.1} parent=0 // pred_region
    _
  $region13: #{model_forward.1} parent=0 // pred_fallthru
    _
  // Predicated region
  $region14: #{model_forward.1} parent=0 // pred_check
    _
  $region15: #{model_forward.1} parent=0 // pred_check_branch
    %20 = sbr.rel (0) target = $region17
  $region16: #{model_forward.1} parent=0 // pred_region
    _
  $region17: #{model_forward.1} parent=0 // pred_fallthru
    _
  // Predicated region
  $region18: #{model_forward.1} parent=0 // pred_check
    _
  $region19: #{model_forward.1} parent=0 // pred_check_branch
    %22 = sbr.rel (0) target = $region21
  $region20: #{model_forward.1} parent=0 // pred_region
    _
  $region21: #{model_forward.1} parent=0 // pred_fallthru
    _
  // Predicated region
  $region22: #{model_forward.1} parent=0 // pred_check
    _
  $region23: #{model_forward.1} parent=0 // pred_check_branch
    %24 = sbr.rel (0) target = $region25
  $region24: #{model_forward.1} parent=0 // pred_region
    _
  $region25: #{model_forward.1} parent=0 // pred_fallthru
    _
  // Predicated region
  $region26: #{model_forward.1} parent=0 // pred_check
    _
  $region27: #{model_forward.1} parent=0 // pred_check_branch
    %26 = sbr.rel (0) target = $region29
  $region28: #{model_forward.1} parent=0 // pred_region
    _
  $region29: #{model_forward.1} parent=0 // pred_fallthru
    _
  // Predicated region
  $region30: #{model_forward.1} parent=0 // pred_check
    _
  $region31: #{model_forward.1} parent=0 // pred_check_branch
    %28 = sbr.rel (0) target = $region33
  $region32: #{model_forward.1} parent=0 // pred_region
    _
  $region33: #{model_forward.1} parent=0 // pred_fallthru
    _
  %v29 = vld [vmem:[%s0] sm:$0xff]
  %v30 = vld [vmem:[%s0 + $0x8] sm:$0xff]
  %v31 = vld [vmem:[%s1] sm:$0xff]
  %v32 = vld [vmem:[%s1 + $0x8] sm:$0xff]
  %v33 = vld [vmem:[%s2] sm:$0xff]
  %v34 = vld [vmem:[%s3] sm:$0xff]
  %v35 = vld [vmem:[%s4] sm:$0x1]
  %vm36 = vcmask 130048
  %v38 = vsel %vm36, %v29, 0
  %v41 = vsel %vm36, %v30, 0
  %43 = vmatprep.subr.mxu0 0.0
  %44 = vmatpush1.msra.mxu0 %v31
  %45 = vmatprep.subr.mxu0 0.0
  %46 = vmatpush1.msra.mxu0 %v32
  %47 = vmatprep.subr.mxu0 0.0
  %48 = vmatpush1.msra.mxu0 0.0
  %49 = vmatprep.subr.mxu0 0.0
  %50 = vmatpush1.msra.mxu0 0.0
  %51 = vmatprep.subr.mxu0 0.0
  %52 = vmatpush1.msra.mxu0 0.0
  %53 = vmatprep.subr.mxu0 0.0
  %54 = vmatpush1.msra.mxu0 0.0
  %55 = vmatprep.subr.mxu0 0.0
  %56 = vmatpush1.msra.mxu0 0.0
  %57 = vmatprep.subr.mxu0 0.0
  %58 = vmatpush1.msra.mxu0 0.0
  %59 = vmatprep.subr.mxu0 0.0
  %60 = vmatpush1.msra.mxu0 0.0
  %61 = vmatprep.subr.mxu0 0.0
  %62 = vmatpush1.msra.mxu0 0.0
  %63 = vmatprep.subr.mxu0 0.0
  %64 = vmatpush1.msra.mxu0 0.0
  %65 = vmatprep.subr.mxu0 0.0
  %66 = vmatpush1.msra.mxu0 0.0
  %67 = vmatprep.subr.mxu0 0.0
  %68 = vmatpush1.msra.mxu0 0.0
  %69 = vmatprep.subr.mxu0 0.0
  %70 = vmatpush1.msra.mxu0 0.0
  %71 = vmatprep.subr.mxu0 0.0
  %72 = vmatpush1.msra.mxu0 0.0
  %73 = vmatprep.subr.mxu0 0.0
  %74 = vmatpush1.msra.mxu0 0.0
  %75 = vmatprep.subr.mxu0 0.0
  %76 = vmatpush1.msra.mxu0 0.0
  %77 = vmatprep.subr.mxu0 0.0
  %78 = vmatpush1.msra.mxu0 0.0
  %79 = vmatprep.subr.mxu0 0.0
  %80 = vmatpush1.msra.mxu0 0.0
  %81 = vmatprep.subr.mxu0 0.0
  %82 = vmatpush1.msra.mxu0 0.0
  %83 = vmatprep.subr.mxu0 0.0
  %84 = vmatpush1.msra.mxu0 0.0
  %85 = vmatprep.subr.mxu0 0.0
  %86 = vmatpush1.msra.mxu0 0.0
  %87 = vmatprep.subr.mxu0 0.0
  %88 = vmatpush1.msra.mxu0 0.0
  %89 = vmatprep.subr.mxu0 0.0
  %90 = vmatpush1.msra.mxu0 0.0
  %91 = vmatprep.subr.mxu0 0.0
  %92 = vmatpush1.msra.mxu0 0.0
  %93 = vmatprep.subr.mxu0 0.0
  %94 = vmatpush1.msra.mxu0 0.0
  %95 = vmatprep.subr.mxu0 0.0
  %96 = vmatpush1.msra.mxu0 0.0
  %97 = vmatprep.subr.mxu0 0.0
  %98 = vmatpush1.msra.mxu0 0.0
  %99 = vmatprep.subr.mxu0 0.0
  %100 = vmatpush1.msra.mxu0 0.0
  %101 = vmatprep.subr.mxu0 0.0
  %102 = vmatpush1.msra.mxu0 0.0
  %103 = vmatprep.subr.mxu0 0.0
  %104 = vmatpush1.msra.mxu0 0.0
  %105 = vmatprep.subr.mxu0 0.0
  %106 = vmatpush1.msra.mxu0 0.0
  %107 = vmatprep.mubr.f32.mxu0 0.0
  %108 = vmatmul.mubr.f32.gmra.mrb[0].mxu0 %v38
  %v109 = vpop.f32.mrb[0].mxu0
  %v110 = vadd.f32 0.0, %v109
  %v111 = vpop.f32.mrb[0].mxu0
  %112 = vmatprep.mubr.f32.mxu0 0.0
  %113 = vmatmul.mubr.f32.gmra.mrb[0].mxu0 %v41
  %v114 = vpop.f32.mrb[0].mxu0
  %v115 = vadd.f32 0.0, %v114
  %v116 = vpop.f32.mrb[0].mxu0
  %117 = vdwg.mxu0
  %vm118 = vcmask 64512
  %v120 = vsel %vm118, %v31, 0
  %v123 = vsel %vm118, %v32, 0
  %125 = vmatprep.subr.mxu0 0.0
  %126 = vmatpush1.msra.mxu0 %v34
  %127 = vmatprep.subr.mxu0 0.0
  %128 = vmatpush1.msra.mxu0 0.0
  %129 = vmatprep.subr.mxu0 0.0
  %130 = vmatpush1.msra.mxu0 0.0
  %131 = vmatprep.subr.mxu0 0.0
  %132 = vmatpush1.msra.mxu0 0.0
  %133 = vmatprep.subr.mxu0 0.0
  %134 = vmatpush1.msra.mxu0 0.0
  %135 = vmatprep.subr.mxu0 0.0
  %136 = vmatpush1.msra.mxu0 0.0
  %137 = vmatprep.subr.mxu0 0.0
  %138 = vmatpush1.msra.mxu0 0.0
  %139 = vmatprep.subr.mxu0 0.0
  %140 = vmatpush1.msra.mxu0 0.0
  %141 = vmatprep.subr.mxu0 0.0
  %142 = vmatpush1.msra.mxu0 0.0
  %143 = vmatprep.subr.mxu0 0.0
  %144 = vmatpush1.msra.mxu0 0.0
  %145 = vmatprep.subr.mxu0 0.0
  %146 = vmatpush1.msra.mxu0 0.0
  %147 = vmatprep.subr.mxu0 0.0
  %148 = vmatpush1.msra.mxu0 0.0
  %149 = vmatprep.subr.mxu0 0.0
  %150 = vmatpush1.msra.mxu0 0.0
  %151 = vmatprep.subr.mxu0 0.0
  %152 = vmatpush1.msra.mxu0 0.0
  %153 = vmatprep.subr.mxu0 0.0
  %154 = vmatpush1.msra.mxu0 0.0
  %155 = vmatprep.subr.mxu0 0.0
  %156 = vmatpush1.msra.mxu0 0.0
  %157 = vmatprep.subr.mxu0 0.0
  %158 = vmatpush1.msra.mxu0 0.0
  %159 = vmatprep.subr.mxu0 0.0
  %160 = vmatpush1.msra.mxu0 0.0
  %161 = vmatprep.subr.mxu0 0.0
  %162 = vmatpush1.msra.mxu0 0.0
  %163 = vmatprep.subr.mxu0 0.0
  %164 = vmatpush1.msra.mxu0 0.0
  %165 = vmatprep.subr.mxu0 0.0
  %166 = vmatpush1.msra.mxu0 0.0
  %167 = vmatprep.subr.mxu0 0.0
  %168 = vmatpush1.msra.mxu0 0.0
  %169 = vmatprep.subr.mxu0 0.0
  %170 = vmatpush1.msra.mxu0 0.0
  %171 = vmatprep.subr.mxu0 0.0
  %172 = vmatpush1.msra.mxu0 0.0
  %173 = vmatprep.subr.mxu0 0.0
  %174 = vmatpush1.msra.mxu0 0.0
  %175 = vmatprep.subr.mxu0 0.0
  %176 = vmatpush1.msra.mxu0 0.0
  %177 = vmatprep.subr.mxu0 0.0
  %178 = vmatpush1.msra.mxu0 0.0
  %179 = vmatprep.subr.mxu0 0.0
  %180 = vmatpush1.msra.mxu0 0.0
  %181 = vmatprep.subr.mxu0 0.0
  %182 = vmatpush1.msra.mxu0 0.0
  %183 = vmatprep.subr.mxu0 0.0
  %184 = vmatpush1.msra.mxu0 0.0
  %185 = vmatprep.subr.mxu0 0.0
  %186 = vmatpush1.msra.mxu0 0.0
  %187 = vmatprep.subr.mxu0 0.0
  %188 = vmatpush1.msra.mxu0 0.0
  %189 = vmatprep.mubr.f32.mxu0 0.0
  %190 = vmatmul.mubr.f32.gmra.mrb[0].mxu0 %v120
  %v191 = vpop.f32.mrb[0].mxu0
  %v192 = vadd.f32 0.0, %v191
  %v193 = vpop.f32.mrb[0].mxu0
  %194 = vmatprep.mubr.f32.mxu0 0.0
  %195 = vmatmul.mubr.f32.gmra.mrb[0].mxu0 %v123
  %v196 = vpop.f32.mrb[0].mxu0
  %v197 = vadd.f32 0.0, %v196
  %v198 = vpop.f32.mrb[0].mxu0
  %199 = vdwg.mxu0
  %v201 = vsel %vm118, %v110, 0
  %v204 = vsel %vm118, %v115, 0
  %206 = vmatprep.subr.mxu0 0.0
  %207 = vmatpush1.msra.mxu0 %v33
  %208 = vmatprep.subr.mxu0 0.0
  %209 = vmatpush1.msra.mxu0 0.0
  %210 = vmatprep.subr.mxu0 0.0
  %211 = vmatpush1.msra.mxu0 0.0
  %212 = vmatprep.subr.mxu0 0.0
  %213 = vmatpush1.msra.mxu0 0.0
  %214 = vmatprep.subr.mxu0 0.0
  %215 = vmatpush1.msra.mxu0 0.0
  %216 = vmatprep.subr.mxu0 0.0
  %217 = vmatpush1.msra.mxu0 0.0
  %218 = vmatprep.subr.mxu0 0.0
  %219 = vmatpush1.msra.mxu0 0.0
  %220 = vmatprep.subr.mxu0 0.0
  %221 = vmatpush1.msra.mxu0 0.0
  %222 = vmatprep.subr.mxu0 0.0
  %223 = vmatpush1.msra.mxu0 0.0
  %224 = vmatprep.subr.mxu0 0.0
  %225 = vmatpush1.msra.mxu0 0.0
  %226 = vmatprep.subr.mxu0 0.0
  %227 = vmatpush1.msra.mxu0 0.0
  %228 = vmatprep.subr.mxu0 0.0
  %229 = vmatpush1.msra.mxu0 0.0
  %230 = vmatprep.subr.mxu0 0.0
  %231 = vmatpush1.msra.mxu0 0.0
  %232 = vmatprep.subr.mxu0 0.0
  %233 = vmatpush1.msra.mxu0 0.0
  %234 = vmatprep.subr.mxu0 0.0
  %235 = vmatpush1.msra.mxu0 0.0
  %236 = vmatprep.subr.mxu0 0.0
  %237 = vmatpush1.msra.mxu0 0.0
  %238 = vmatprep.subr.mxu0 0.0
  %239 = vmatpush1.msra.mxu0 0.0
  %240 = vmatprep.subr.mxu0 0.0
  %241 = vmatpush1.msra.mxu0 0.0
  %242 = vmatprep.subr.mxu0 0.0
  %243 = vmatpush1.msra.mxu0 0.0
  %244 = vmatprep.subr.mxu0 0.0
  %245 = vmatpush1.msra.mxu0 0.0
  %246 = vmatprep.subr.mxu0 0.0
  %247 = vmatpush1.msra.mxu0 0.0
  %248 = vmatprep.subr.mxu0 0.0
  %249 = vmatpush1.msra.mxu0 0.0
  %250 = vmatprep.subr.mxu0 0.0
  %251 = vmatpush1.msra.mxu0 0.0
  %252 = vmatprep.subr.mxu0 0.0
  %253 = vmatpush1.msra.mxu0 0.0
  %254 = vmatprep.subr.mxu0 0.0
  %255 = vmatpush1.msra.mxu0 0.0
  %256 = vmatprep.subr.mxu0 0.0
  %257 = vmatpush1.msra.mxu0 0.0
  %258 = vmatprep.subr.mxu0 0.0
  %259 = vmatpush1.msra.mxu0 0.0
  %260 = vmatprep.subr.mxu0 0.0
  %261 = vmatpush1.msra.mxu0 0.0
  %262 = vmatprep.subr.mxu0 0.0
  %263 = vmatpush1.msra.mxu0 0.0
  %264 = vmatprep.subr.mxu0 0.0
  %265 = vmatpush1.msra.mxu0 0.0
  %266 = vmatprep.subr.mxu0 0.0
  %267 = vmatpush1.msra.mxu0 0.0
  %268 = vmatprep.subr.mxu0 0.0
  %269 = vmatpush1.msra.mxu0 0.0
  %270 = vmatprep.mubr.f32.mxu0 0.0
  %271 = vmatmul.mubr.f32.gmra.mrb[0].mxu0 %v201
  %v272 = vpop.f32.mrb[0].mxu0
  %v273 = vadd.f32 %v192, %v272
  %v274 = vpop.f32.mrb[0].mxu0
  %275 = vmatprep.mubr.f32.mxu0 0.0
  %276 = vmatmul.mubr.f32.gmra.mrb[0].mxu0 %v204
  %v277 = vpop.f32.mrb[0].mxu0
  %v278 = vadd.f32 %v197, %v277
  %v279 = vpop.f32.mrb[0].mxu0
  %280 = vdwg.mxu0
  %v282 = vlaneseq
  %v283 = vshrl.u32 %v282, 7
  %v284 = vsub.s32 0, %v283
  %v285 = vrot.slane %v35, %v284
  %v287 = vadd.f32 %v273, %v285
  %v288 = vadd.f32 %v278, %v285
  %v289 = vmax.f32 %v287, 0.0
  %v290 = vmax.f32 %v288, 0.0
  %v291 = vld [vmem:[%s5] sm:$0xff]
  %v292 = vld [vmem:[%s5 + $0x8] sm:$0xff]
  %v293 = vld [vmem:[%s6] sm:$0xff]
  %v294 = vld [vmem:[%s6 + $0x8] sm:$0xff]
  %v295 = vld [vmem:[%s7] sm:$0x1]
  %v297 = vsel %vm36, %v289, 0
  %v300 = vsel %vm36, %v290, 0
  %302 = vmatprep.subr.mxu0 0.0
  %303 = vmatpush1.msra.mxu0 %v291
  %304 = vmatprep.subr.mxu0 0.0
  %305 = vmatpush1.msra.mxu0 %v292
  %306 = vmatprep.subr.mxu0 0.0
  %307 = vmatpush1.msra.mxu0 0.0
  %308 = vmatprep.subr.mxu0 0.0
  %309 = vmatpush1.msra.mxu0 0.0
  %310 = vmatprep.subr.mxu0 0.0
  %311 = vmatpush1.msra.mxu0 0.0
  %312 = vmatprep.subr.mxu0 0.0
  %313 = vmatpush1.msra.mxu0 0.0
  %314 = vmatprep.subr.mxu0 0.0
  %315 = vmatpush1.msra.mxu0 0.0
  %316 = vmatprep.subr.mxu0 0.0
  %317 = vmatpush1.msra.mxu0 0.0
  %318 = vmatprep.subr.mxu0 0.0
  %319 = vmatpush1.msra.mxu0 0.0
  %320 = vmatprep.subr.mxu0 0.0
  %321 = vmatpush1.msra.mxu0 0.0
  %322 = vmatprep.subr.mxu0 0.0
  %323 = vmatpush1.msra.mxu0 0.0
  %324 = vmatprep.subr.mxu0 0.0
  %325 = vmatpush1.msra.mxu0 0.0
  %326 = vmatprep.subr.mxu0 0.0
  %327 = vmatpush1.msra.mxu0 0.0
  %328 = vmatprep.subr.mxu0 0.0
  %329 = vmatpush1.msra.mxu0 0.0
  %330 = vmatprep.subr.mxu0 0.0
  %331 = vmatpush1.msra.mxu0 0.0
  %332 = vmatprep.subr.mxu0 0.0
  %333 = vmatpush1.msra.mxu0 0.0
  %334 = vmatprep.subr.mxu0 0.0
  %335 = vmatpush1.msra.mxu0 0.0
  %336 = vmatprep.subr.mxu0 0.0
  %337 = vmatpush1.msra.mxu0 0.0
  %338 = vmatprep.subr.mxu0 0.0
  %339 = vmatpush1.msra.mxu0 0.0
  %340 = vmatprep.subr.mxu0 0.0
  %341 = vmatpush1.msra.mxu0 0.0
  %342 = vmatprep.subr.mxu0 0.0
  %343 = vmatpush1.msra.mxu0 0.0
  %344 = vmatprep.subr.mxu0 0.0
  %345 = vmatpush1.msra.mxu0 0.0
  %346 = vmatprep.subr.mxu0 0.0
  %347 = vmatpush1.msra.mxu0 0.0
  %348 = vmatprep.subr.mxu0 0.0
  %349 = vmatpush1.msra.mxu0 0.0
  %350 = vmatprep.subr.mxu0 0.0
  %351 = vmatpush1.msra.mxu0 0.0
  %352 = vmatprep.subr.mxu0 0.0
  %353 = vmatpush1.msra.mxu0 0.0
  %354 = vmatprep.subr.mxu0 0.0
  %355 = vmatpush1.msra.mxu0 0.0
  %356 = vmatprep.subr.mxu0 0.0
  %357 = vmatpush1.msra.mxu0 0.0
  %358 = vmatprep.subr.mxu0 0.0
  %359 = vmatpush1.msra.mxu0 0.0
  %360 = vmatprep.subr.mxu0 0.0
  %361 = vmatpush1.msra.mxu0 0.0
  %362 = vmatprep.subr.mxu0 0.0
  %363 = vmatpush1.msra.mxu0 0.0
  %364 = vmatprep.subr.mxu0 0.0
  %365 = vmatpush1.msra.mxu0 0.0
  %366 = vmatprep.mubr.f32.mxu0 0.0
  %367 = vmatmul.mubr.f32.gmra.mrb[0].mxu0 %v297
  %v368 = vpop.f32.mrb[0].mxu0
  %v369 = vadd.f32 0.0, %v368
  %v370 = vpop.f32.mrb[0].mxu0
  %371 = vmatprep.mubr.f32.mxu0 0.0
  %372 = vmatmul.mubr.f32.gmra.mrb[0].mxu0 %v300
  %v373 = vpop.f32.mrb[0].mxu0
  %v374 = vadd.f32 0.0, %v373
  %v375 = vpop.f32.mrb[0].mxu0
  %376 = vdwg.mxu0
  %377 = vmatprep.subr.mxu0 0.0
  %378 = vmatpush1.msra.mxu0 %v293
  %379 = vmatprep.subr.mxu0 0.0
  %380 = vmatpush1.msra.mxu0 %v294
  %381 = vmatprep.subr.mxu0 0.0
  %382 = vmatpush1.msra.mxu0 0.0
  %383 = vmatprep.subr.mxu0 0.0
  %384 = vmatpush1.msra.mxu0 0.0
  %385 = vmatprep.subr.mxu0 0.0
  %386 = vmatpush1.msra.mxu0 0.0
  %387 = vmatprep.subr.mxu0 0.0
  %388 = vmatpush1.msra.mxu0 0.0
  %389 = vmatprep.subr.mxu0 0.0
  %390 = vmatpush1.msra.mxu0 0.0
  %391 = vmatprep.subr.mxu0 0.0
  %392 = vmatpush1.msra.mxu0 0.0
  %393 = vmatprep.subr.mxu0 0.0
  %394 = vmatpush1.msra.mxu0 0.0
  %395 = vmatprep.subr.mxu0 0.0
  %396 = vmatpush1.msra.mxu0 0.0
  %397 = vmatprep.subr.mxu0 0.0
  %398 = vmatpush1.msra.mxu0 0.0
  %399 = vmatprep.subr.mxu0 0.0
  %400 = vmatpush1.msra.mxu0 0.0
  %401 = vmatprep.subr.mxu0 0.0
  %402 = vmatpush1.msra.mxu0 0.0
  %403 = vmatprep.subr.mxu0 0.0
  %404 = vmatpush1.msra.mxu0 0.0
  %405 = vmatprep.subr.mxu0 0.0
  %406 = vmatpush1.msra.mxu0 0.0
  %407 = vmatprep.subr.mxu0 0.0
  %408 = vmatpush1.msra.mxu0 0.0
  %409 = vmatprep.subr.mxu0 0.0
  %410 = vmatpush1.msra.mxu0 0.0
  %411 = vmatprep.subr.mxu0 0.0
  %412 = vmatpush1.msra.mxu0 0.0
  %413 = vmatprep.subr.mxu0 0.0
  %414 = vmatpush1.msra.mxu0 0.0
  %415 = vmatprep.subr.mxu0 0.0
  %416 = vmatpush1.msra.mxu0 0.0
  %417 = vmatprep.subr.mxu0 0.0
  %418 = vmatpush1.msra.mxu0 0.0
  %419 = vmatprep.subr.mxu0 0.0
  %420 = vmatpush1.msra.mxu0 0.0
  %421 = vmatprep.subr.mxu0 0.0
  %422 = vmatpush1.msra.mxu0 0.0
  %423 = vmatprep.subr.mxu0 0.0
  %424 = vmatpush1.msra.mxu0 0.0
  %425 = vmatprep.subr.mxu0 0.0
  %426 = vmatpush1.msra.mxu0 0.0
  %427 = vmatprep.subr.mxu0 0.0
  %428 = vmatpush1.msra.mxu0 0.0
  %429 = vmatprep.subr.mxu0 0.0
  %430 = vmatpush1.msra.mxu0 0.0
  %431 = vmatprep.subr.mxu0 0.0
  %432 = vmatpush1.msra.mxu0 0.0
  %433 = vmatprep.subr.mxu0 0.0
  %434 = vmatpush1.msra.mxu0 0.0
  %435 = vmatprep.subr.mxu0 0.0
  %436 = vmatpush1.msra.mxu0 0.0
  %437 = vmatprep.subr.mxu0 0.0
  %438 = vmatpush1.msra.mxu0 0.0
  %439 = vmatprep.subr.mxu0 0.0
  %440 = vmatpush1.msra.mxu0 0.0
  %441 = vmatprep.mubr.f32.mxu0 0.0
  %442 = vmatmul.mubr.f32.gmra.mrb[0].mxu0 %v297
  %v443 = vpop.f32.mrb[0].mxu0
  %v444 = vadd.f32 0.0, %v443
  %v445 = vpop.f32.mrb[0].mxu0
  %446 = vmatprep.mubr.f32.mxu0 0.0
  %447 = vmatmul.mubr.f32.gmra.mrb[0].mxu0 %v300
  %v448 = vpop.f32.mrb[0].mxu0
  %v449 = vadd.f32 0.0, %v448
  %v450 = vpop.f32.mrb[0].mxu0
  %451 = vdwg.mxu0
  %452 = vmatprep.subr.mxu0 0.0
  %453 = vmatpush1.msra.mxu0 %v369
  %454 = vmatprep.subr.mxu0 0.0
  %455 = vmatpush1.msra.mxu0 %v374
  %456 = vmatprep.subr.mxu0 0.0
  %457 = vmatpush1.msra.mxu0 0.0
  %458 = vmatprep.subr.mxu0 0.0
  %459 = vmatpush1.msra.mxu0 0.0
  %460 = vmatprep.subr.mxu0 0.0
  %461 = vmatpush1.msra.mxu0 0.0
  %462 = vmatprep.subr.mxu0 0.0
  %463 = vmatpush1.msra.mxu0 0.0
  %464 = vmatprep.subr.mxu0 0.0
  %465 = vmatpush1.msra.mxu0 0.0
  %466 = vmatprep.subr.mxu0 0.0
  %467 = vmatpush1.msra.mxu0 0.0
  %468 = vmatprep.subr.mxu0 0.0
  %469 = vmatpush1.msra.mxu0 0.0
  %470 = vmatprep.subr.mxu0 0.0
  %471 = vmatpush1.msra.mxu0 0.0
  %472 = vmatprep.subr.mxu0 0.0
  %473 = vmatpush1.msra.mxu0 0.0
  %474 = vmatprep.subr.mxu0 0.0
  %475 = vmatpush1.msra.mxu0 0.0
  %476 = vmatprep.subr.mxu0 0.0
  %477 = vmatpush1.msra.mxu0 0.0
  %478 = vmatprep.subr.mxu0 0.0
  %479 = vmatpush1.msra.mxu0 0.0
  %480 = vmatprep.subr.mxu0 0.0
  %481 = vmatpush1.msra.mxu0 0.0
  %482 = vmatprep.subr.mxu0 0.0
  %483 = vmatpush1.msra.mxu0 0.0
  %484 = vmatprep.subr.mxu0 0.0
  %485 = vmatpush1.msra.mxu0 0.0
  %486 = vmatprep.subr.mxu0 0.0
  %487 = vmatpush1.msra.mxu0 0.0
  %488 = vmatprep.subr.mxu0 0.0
  %489 = vmatpush1.msra.mxu0 0.0
  %490 = vmatprep.subr.mxu0 0.0
  %491 = vmatpush1.msra.mxu0 0.0
  %492 = vmatprep.subr.mxu0 0.0
  %493 = vmatpush1.msra.mxu0 0.0
  %494 = vmatprep.subr.mxu0 0.0
  %495 = vmatpush1.msra.mxu0 0.0
  %496 = vmatprep.subr.mxu0 0.0
  %497 = vmatpush1.msra.mxu0 0.0
  %498 = vmatprep.subr.mxu0 0.0
  %499 = vmatpush1.msra.mxu0 0.0
  %500 = vmatprep.subr.mxu0 0.0
  %501 = vmatpush1.msra.mxu0 0.0
  %502 = vmatprep.subr.mxu0 0.0
  %503 = vmatpush1.msra.mxu0 0.0
  %504 = vmatprep.subr.mxu0 0.0
  %505 = vmatpush1.msra.mxu0 0.0
  %506 = vmatprep.subr.mxu0 0.0
  %507 = vmatpush1.msra.mxu0 0.0
  %508 = vmatprep.subr.mxu0 0.0
  %509 = vmatpush1.msra.mxu0 0.0
  %510 = vmatprep.subr.mxu0 0.0
  %511 = vmatpush1.msra.mxu0 0.0
  %512 = vmatprep.subr.mxu0 0.0
  %513 = vmatpush1.msra.mxu0 0.0
  %514 = vmatprep.subr.mxu0 0.0
  %515 = vmatpush1.msra.mxu0 0.0
  %516 = vmatprep.mubr.f32.mxu0 0.0
  %517 = vmatmul.mubr.f32.gmra.mrb[0].mxu0 %v38
  %v518 = vpop.f32.mrb[0].mxu0
  %v519 = vadd.f32 %v444, %v518
  %v520 = vpop.f32.mrb[0].mxu0
  %521 = vmatprep.mubr.f32.mxu0 0.0
  %522 = vmatmul.mubr.f32.gmra.mrb[0].mxu0 %v41
  %v523 = vpop.f32.mrb[0].mxu0
  %v524 = vadd.f32 %v449, %v523
  %v525 = vpop.f32.mrb[0].mxu0
  %526 = vdwg.mxu0
  %v528 = vlaneseq
  %v529 = vshrl.u32 %v528, 7
  %v530 = vsub.s32 0, %v529
  %v531 = vrot.slane %v295, %v530
  %v533 = vadd.f32 %v519, %v531
  %v534 = vadd.f32 %v524, %v531
  %vm535 = vcmask 15360
  %536 = vst.msk [vmem:[%s8] sm:$0xff] %vm535, %v533
  %537 = vst.msk [vmem:[%s8 + $0x8] sm:$0xff] %vm535, %v534
  // Predicated region
  $region34: #{model_forward.1} parent=0 // pred_check
    _
  $region35: #{model_forward.1} parent=0 // pred_check_branch
    %539 = sbr.rel (0) target = $region37
  $region36: #{model_forward.1} parent=0 // pred_region
    _
  $region37: #{model_forward.1} parent=0 // pred_fallthru
    _
  // Predicated region
  $region38: #{model_forward.1} parent=0 // pred_check
    _
  $region39: #{model_forward.1} parent=0 // pred_check_branch
    %541 = sbr.rel (0) target = $region41
  $region40: #{model_forward.1} parent=0 // pred_region
    _
  $region41: #{model_forward.1} parent=0 // pred_fallthru
    _

</llo_original>
